<compile_context>
chip_gen: v7x
topology: tpu7x:2x2x1
jax: 0.10.0
libtpu: 0.0.40
codegen_flags: <defaults>
</compile_context>

<pallas_src>
import jax
import jax.numpy as jnp
from jax.experimental import pallas as pl
from jax.experimental.pallas import tpu as pltpu


def scse_kernel(w_ref, b_ref, g2_ref, x_ref, o_ref):
    # w_ref:  (C,)       SMEM  sSE 1x1-conv weights (scalars)
    # b_ref:  (1,)       SMEM  sSE bias
    # g2_ref: (1, C, 1)  VMEM  per-(n, c) cSE channel gate
    # x_ref:  (1, C, T)  VMEM  input tile
    # o_ref:  (1, C, T)  VMEM  gated output tile
    x = x_ref[0]                                       # (C, T) f32
    C, T = x.shape

    # sSE spatial gate: sum_c w[c] * x[c, :] + b as an unrolled VPU FMA over
    # channels (an M=1/K=C MXU dot would waste the systolic array).
    acc = jnp.zeros((1, T), jnp.float32) + b_ref[0]
    for c in range(C):                                 # static unroll, C small
        acc = acc + w_ref[c] * x[c:c + 1, :]
    g1 = jax.nn.sigmoid(acc)                           # (1, T)

    g2 = g2_ref[0]                                     # (C, 1) channel gate
    # g1*x + g2*x == x * (g1 + g2); (1,T) + (C,1) broadcasts to (C,T) on VPU.
    o_ref[0] = (x * (g1 + g2)).astype(o_ref.dtype)


def _pick_tile_hw(hw, c, n, target_bytes=2 << 20):
    """Largest multiple-of-128 tile dividing hw with C*tile*4B <= target."""
    if hw % 128 != 0:
        return hw                      # full-extent block (legal, small maps)
    row_bytes = 4 * max(c, 8)          # f32, sublane-padded to 8
    max_lanes = max(128, (target_bytes // row_bytes) // 128 * 128)
    tile = min(hw, max_lanes)
    while hw % tile != 0:
        tile -= 128
    # Keep >= 2 parallel grid steps so dual-TC chips (v7x) get work at N == 1.
    if n == 1 and hw // tile < 2 and hw >= 256:
        tile = max(128, (hw // 2) // 128 * 128)
        while hw % tile != 0:
            tile -= 128
    return tile


def scse_forward(x_nchw, sse_w, sse_b, cse_w1, cse_b1, cse_w2, cse_b2):
    """scSE block: g1*x + g2*x with PyTorch-layout parameters.

    x_nchw: (N, C, H, W) f32
    sse_w: (1, C, 1, 1), sse_b: (1,)
    cse_w1: (C//2, C, 1, 1), cse_b1: (C//2,)
    cse_w2: (C, C//2, 1, 1), cse_b2: (C,)
    """
    N, C, H, W = x_nchw.shape
    HW = H * W
    Ch = cse_w1.shape[0]

    # cSE channel gate (global avg-pool -> 1x1 conv -> relu -> 1x1 conv ->
    # sigmoid). Needs the global spatial mean, so it is computed in plain JAX;
    # its result is fed to the kernel so the g2*x add is fused with g1*x.
    pooled = jnp.mean(x_nchw, axis=(2, 3))                        # (N, C)
    h = jnp.maximum(pooled @ cse_w1.reshape(Ch, C).T + cse_b1, 0.0)
    g2 = jax.nn.sigmoid(h @ cse_w2.reshape(C, Ch).T + cse_b2)     # (N, C)

    tile = _pick_tile_hw(HW, C, N)
    grid = (N, HW // tile)

    xf = x_nchw.reshape(N, C, HW)
    out = pl.pallas_call(
        scse_kernel,
        out_shape=jax.ShapeDtypeStruct((N, C, HW), x_nchw.dtype),
        grid_spec=pltpu.PrefetchScalarGridSpec(
            num_scalar_prefetch=0,
            grid=grid,
            in_specs=[
                # constants live in SMEM: no per-step VMEM DMA / (8,128) pad
                pl.BlockSpec(memory_space=pltpu.MemorySpace.SMEM),   # sse_w
                pl.BlockSpec(memory_space=pltpu.MemorySpace.SMEM),   # sse_b
                pl.BlockSpec((1, C, 1), lambda n, t: (n, 0, 0)),     # g2
                pl.BlockSpec((1, C, tile), lambda n, t: (n, 0, t)),  # x tile
            ],
            out_specs=pl.BlockSpec((1, C, tile), lambda n, t: (n, 0, t)),
        ),
        compiler_params=pltpu.CompilerParams(
            dimension_semantics=("parallel", "parallel")),
    )(sse_w.reshape(C), sse_b.reshape(1), g2.reshape(N, C, 1), xf)
    return out.reshape(N, C, H, W)


if __name__ == "__main__":
    N, C, H, W = 2, 4, 16, 16
    Ch = C // 2

    key = jax.random.PRNGKey(0)
    kx, k1, k2, k3, k4, k5, k6 = jax.random.split(key, 7)

    x = jax.random.normal(kx, (N, C, H, W), dtype=jnp.float32)

    # PyTorch-default Conv2d init: U(-1/sqrt(fan_in), +1/sqrt(fan_in)).
    b_c = 1.0 / float(C) ** 0.5
    b_h = 1.0 / float(Ch) ** 0.5
    sse_w = jax.random.uniform(k1, (1, C, 1, 1), jnp.float32, -b_c, b_c)
    sse_b = jax.random.uniform(k2, (1,), jnp.float32, -b_c, b_c)
    cse_w1 = jax.random.uniform(k3, (Ch, C, 1, 1), jnp.float32, -b_c, b_c)
    cse_b1 = jax.random.uniform(k4, (Ch,), jnp.float32, -b_c, b_c)
    cse_w2 = jax.random.uniform(k5, (C, Ch, 1, 1), jnp.float32, -b_h, b_h)
    cse_b2 = jax.random.uniform(k6, (C,), jnp.float32, -b_h, b_h)

    out = scse_forward(x, sse_w, sse_b, cse_w1, cse_b1, cse_w2, cse_b2)
    out = jax.block_until_ready(out)

    # Pure-JAX reference for the scSE block of the Decoder.
    g1_ref = jax.nn.sigmoid(
        jnp.einsum("nchw,c->nhw", x, sse_w.reshape(C)) + sse_b[0])[:, None]
    pooled = jnp.mean(x, axis=(2, 3))
    h_ref = jnp.maximum(pooled @ cse_w1.reshape(Ch, C).T + cse_b1, 0.0)
    g2_ref = jax.nn.sigmoid(
        h_ref @ cse_w2.reshape(C, Ch).T + cse_b2)[:, :, None, None]
    ref = g1_ref * x + g2_ref * x

    assert out.shape == (N, C, H, W)
    assert jnp.allclose(out, ref, atol=1e-5, rtol=1e-5)

    print("KERNEL_OK")
</pallas_src>

<mosaic_0001>
module attributes {stable_mosaic.version = 11 : i64} {
  func.func @scse_kernel(%arg0: i32, %arg1: i32, %arg2: memref<4xf32, #tpu.memory_space<smem>>, %arg3: memref<1xf32, #tpu.memory_space<smem>>, %arg4: memref<1x4x1xf32, #tpu.memory_space<vmem>>, %arg5: memref<1x4x256xf32, #tpu.memory_space<vmem>>, %arg6: memref<1x4x256xf32, #tpu.memory_space<vmem>>) attributes {dimension_semantics = [#tpu.dimension_semantics<parallel>, #tpu.dimension_semantics<parallel>], iteration_bounds = array<i64: 2, 1>, scalar_prefetch = 0 : i64, scratch_operands = 0 : i64, tpu.core_type = #tpu.core_type<tc>, window_params = [{transform_indices = @transform_0, window_bounds = array<i64: 4>}, {transform_indices = @transform_1, window_bounds = array<i64: 1>}, {transform_indices = @transform_2, window_bounds = array<i64: 1, 4, 1>}, {transform_indices = @transform_3, window_bounds = array<i64: 1, 4, 256>}, {transform_indices = @transform_4, window_bounds = array<i64: 1, 4, 256>}]} {
    %c0 = arith.constant 0 : index
    %c0_0 = arith.constant 0 : index
    %c0_1 = arith.constant 0 : index
    %0 = vector.load %arg5[%c0, %c0_0, %c0_1] : memref<1x4x256xf32, #tpu.memory_space<vmem>>, vector<1x4x256xf32>
    %1 = vector.shape_cast %0 : vector<1x4x256xf32> to vector<4x256xf32>
    %cst = arith.constant 0.000000e+00 : f32
    %2 = vector.broadcast %cst : f32 to vector<1x256xf32>
    %c0_2 = arith.constant 0 : index
    %3 = memref.load %arg3[%c0_2] : memref<1xf32, #tpu.memory_space<smem>>
    %4 = vector.broadcast %3 : f32 to vector<1x256xf32>
    %5 = arith.addf %2, %4 : vector<1x256xf32>
    %c0_3 = arith.constant 0 : index
    %6 = memref.load %arg2[%c0_3] : memref<4xf32, #tpu.memory_space<smem>>
    %7 = vector.extract_strided_slice %1 {offsets = [0, 0], sizes = [1, 256], strides = [1, 1]} : vector<4x256xf32> to vector<1x256xf32>
    %8 = vector.broadcast %6 : f32 to vector<1x256xf32>
    %9 = arith.mulf %8, %7 : vector<1x256xf32>
    %10 = arith.addf %5, %9 : vector<1x256xf32>
    %c1 = arith.constant 1 : index
    %11 = memref.load %arg2[%c1] : memref<4xf32, #tpu.memory_space<smem>>
    %12 = vector.extract_strided_slice %1 {offsets = [1, 0], sizes = [1, 256], strides = [1, 1]} : vector<4x256xf32> to vector<1x256xf32>
    %13 = vector.broadcast %11 : f32 to vector<1x256xf32>
    %14 = arith.mulf %13, %12 : vector<1x256xf32>
    %15 = arith.addf %10, %14 : vector<1x256xf32>
    %c2 = arith.constant 2 : index
    %16 = memref.load %arg2[%c2] : memref<4xf32, #tpu.memory_space<smem>>
    %17 = vector.extract_strided_slice %1 {offsets = [2, 0], sizes = [1, 256], strides = [1, 1]} : vector<4x256xf32> to vector<1x256xf32>
    %18 = vector.broadcast %16 : f32 to vector<1x256xf32>
    %19 = arith.mulf %18, %17 : vector<1x256xf32>
    %20 = arith.addf %15, %19 : vector<1x256xf32>
    %c3 = arith.constant 3 : index
    %21 = memref.load %arg2[%c3] : memref<4xf32, #tpu.memory_space<smem>>
    %22 = vector.extract_strided_slice %1 {offsets = [3, 0], sizes = [1, 256], strides = [1, 1]} : vector<4x256xf32> to vector<1x256xf32>
    %23 = vector.broadcast %21 : f32 to vector<1x256xf32>
    %24 = arith.mulf %23, %22 : vector<1x256xf32>
    %25 = arith.addf %20, %24 : vector<1x256xf32>
    %26 = arith.negf %25 : vector<1x256xf32>
    %27 = math.exp %26 : vector<1x256xf32>
    %cst_4 = arith.constant 1.000000e+00 : f32
    %28 = vector.broadcast %cst_4 : f32 to vector<1x256xf32>
    %29 = arith.addf %28, %27 : vector<1x256xf32>
    %30 = arith.divf %28, %29 : vector<1x256xf32>
    %c0_5 = arith.constant 0 : index
    %c0_6 = arith.constant 0 : index
    %c0_7 = arith.constant 0 : index
    %31 = vector.load %arg4[%c0_5, %c0_6, %c0_7] : memref<1x4x1xf32, #tpu.memory_space<vmem>>, vector<1x4x1xf32>
    %32 = vector.shape_cast %31 : vector<1x4x1xf32> to vector<4x1xf32>
    %33 = vector.broadcast %30 : vector<1x256xf32> to vector<4x256xf32>
    %34 = vector.broadcast %32 : vector<4x1xf32> to vector<4x256xf32>
    %35 = arith.addf %33, %34 : vector<4x256xf32>
    %36 = arith.mulf %1, %35 : vector<4x256xf32>
    %c0_8 = arith.constant 0 : index
    %c0_9 = arith.constant 0 : index
    %c0_10 = arith.constant 0 : index
    %37 = vector.load %arg6[%c0_8, %c0_9, %c0_10] : memref<1x4x256xf32, #tpu.memory_space<vmem>>, vector<1x4x256xf32>
    %38 = vector.shape_cast %37 : vector<1x4x256xf32> to vector<4x256xf32>
    %39 = vector.shape_cast %36 : vector<4x256xf32> to vector<1x4x256xf32>
    tpu.vector_store %arg6[%c0_8, %c0_9, %c0_10], %39 {strides = array<i32>} : memref<1x4x256xf32, #tpu.memory_space<vmem>>, vector<1x4x256xf32>,
    return
  }
  func.func @transform_0(%arg0: i32, %arg1: i32) -> i32 {
    %c0_i32 = arith.constant 0 : i32
    %c0_i32_0 = arith.constant 0 : i32
    return %c0_i32 : i32
  }
  func.func @transform_1(%arg0: i32, %arg1: i32) -> i32 {
    %c0_i32 = arith.constant 0 : i32
    %c0_i32_0 = arith.constant 0 : i32
    return %c0_i32 : i32
  }
  func.func @transform_2(%arg0: i32, %arg1: i32) -> (i32, i32, i32) {
    %c0_i32 = arith.constant 0 : i32
    %c0_i32_0 = arith.constant 0 : i32
    %c0_i32_1 = arith.constant 0 : i32
    return %arg0, %c0_i32, %c0_i32_0 : i32, i32, i32
  }
  func.func @transform_3(%arg0: i32, %arg1: i32) -> (i32, i32, i32) {
    %c0_i32 = arith.constant 0 : i32
    %c0_i32_0 = arith.constant 0 : i32
    return %arg0, %c0_i32, %arg1 : i32, i32, i32
  }
  func.func @transform_4(%arg0: i32, %arg1: i32) -> (i32, i32, i32) {
    %c0_i32 = arith.constant 0 : i32
    %c0_i32_0 = arith.constant 0 : i32
    return %arg0, %c0_i32, %arg1 : i32, i32, i32
  }
}

</mosaic_0001>

<llo_original>
// kernel: tpu_custom_call.1
$region0: #{tpu_custom_call.1}
  #allocation0 [shape = 'u32[]', space=smem, size = 0x4, offset = 0x4, fixed_abs, tag = 'smem constant byte address 0x4 - core index']
  #allocation1 [shape = 'u32[144,128]{1,0:T(1,128)}', space=vmem, size = 0x12000, scoped, tag = 'internal scratch']
  #allocation2 [shape = 'f32[1]{0:T(128)S(6)}', space=smem, size = 0x200, scoped, tag = 'scoped memory for tpu_custom_call.1']
  %s0 = inlined_call_operand.vmem [shape: f32[4], index: 0, kind: input, shape index: {}]
  %s1 = inlined_call_operand.<no memory space> [shape: f32[1], index: 1, kind: input, shape index: {}]
  %s2 = inlined_call_operand.vmem [shape: f32[2,4,1], index: 2, kind: input, shape index: {}]
  %s3 = inlined_call_operand.vmem [shape: f32[2,4,256], index: 3, kind: input, shape index: {}]
  %s4 = inlined_call_operand.hbm [shape: f32[2,4,256], index: 4, kind: output, shape index: {}]
  %s5 = sld [smem:[#allocation0]]
  $region53: #{tpu_custom_call.1} parent=0
    _
  %s7 = ssub.s32 1, %s5
  %s8 = scalar_select 0, %s7, %s5
  %9 = sst [smem:[#allocation2]] %s1
  $region1: #{tpu_custom_call.1} parent=0
    #allocation3 [shape = 'u8[512]{0}', space=smem, size = 0x200, scoped, tag = 'input window, operand 0, single buffered']
    #allocation4 [shape = 's32[2]{0}', space=sflag, size = 0x8, scoped, tag = 'scoped memory for tpu_custom_call.1']
    #allocation5 [shape = 's32[2]{0}', space=sflag, size = 0x8, scoped, tag = 'scoped memory for tpu_custom_call.1']
    #allocation6 [shape = 'u8[8192]{0}', space=vmem, size = 0x2000, scoped, tag = 'output window, operand 0']
    %10 = vsyncpa [#allocation5], 0
    %11 = vsyncpa [#allocation4], 0
    %s12 = scalar_lea.sflag [#allocation4], 1
    %13 = vsyncpa %s12, 0
    loop: start=0, step=1, limit=4
    $region2: #{tpu_custom_call.1} parent=1 // loop_pre_header
      _
    $region3: #{tpu_custom_call.1} parent=1 // loop_header
      %s15 = sphi 0, %s19
      %p16 = scmp.ge.s32.totalorder %s15, 4
      %s22 = sphi 0, %s34
      %s23 = sphi 0, %s30
      %s24 = sphi 0, %s22
      %s25 = sphi 0, %s23
      %s26 = sphi 0, %s24
      %s27 = sphi 0, %s25
      %s35 = sphi 0, %s35
      %s37 = sphi 0, %s35
      %s38 = sphi 0, %s37
      %s52 = sphi 0, %s38
      %s56 = sphi 0, %s56
      %s58 = sphi 0, %s56
      %s59 = sphi 0, %s58
      %s73 = sphi 0, %s59
      %s79 = sphi 0, %s81
      %s82 = sphi 0, %s79
      %s83 = sphi 0, %s82
      %s99 = sphi 0, %s83
      %s107 = sphi 0, %s109
      %s110 = sphi 0, %s107
      %s111 = sphi 0, %s110
      %s127 = sphi 0, %s111
      %s135 = sphi 0, %s137
      %s138 = sphi 0, %s135
      %s139 = sphi 0, %s138
      %s155 = sphi 0, %s139
    $region4: #{tpu_custom_call.1} parent=1 // loop_header_branch
      %18 = sbr.rel (%p16) target = $region8
    $region5: #{tpu_custom_call.1} parent=1 // loop_body
      %s20 = ssub.s32 %s15, 1
      %s21 = ssub.s32 %s15, 2
      %s28 = sadd.s32 1, %s23
      %p29 = scmp.ge.s32.totalorder %s28, 1
      %s30 = scalar_select %p29, 0, %s28
      %s31 = sadd.s32 1, %s22
      %s32 = scalar_select %p29, %s31, %s22
      %p33 = scmp.ge.s32.totalorder %s32, 2
      %s34 = scalar_select %p33, 0, %s32
      %s36 = sadd.s32 %s35, 1
      %p39 = scmp.eq.s32.totalorder %s15, 1
      %p40 = scmp.ne.s32.totalorder %s35, %s37
      %p41 = scmp.eq.s32.totalorder %s15, 0
      %p42 = por %p40, %p41
      %p43 = scmp.ne.s32.totalorder %s35, %s37
      %p44 = scmp.eq.s32.totalorder %s20, 1
      %p45 = por %p43, %p44
      %p46 = scmp.ne.s32.totalorder %s37, %s38
      %p47 = scmp.eq.s32.totalorder %s20, 0
      %p48 = por %p46, %p47
      %p49 = scmp.ne.s32.totalorder %s37, %s38
      %p50 = scmp.eq.s32.totalorder %s21, 1
      %p51 = por %p49, %p50
      %p53 = scmp.ne.s32.totalorder %s38, %s52
      %p54 = scmp.eq.s32.totalorder %s21, 0
      %p55 = por %p53, %p54
      %s57 = sadd.s32 %s56, 1
      %p60 = scmp.eq.s32.totalorder %s15, 1
      %p61 = scmp.ne.s32.totalorder %s56, %s58
      %p62 = scmp.eq.s32.totalorder %s15, 0
      %p63 = por %p61, %p62
      %p64 = scmp.ne.s32.totalorder %s56, %s58
      %p65 = scmp.eq.s32.totalorder %s20, 1
      %p66 = por %p64, %p65
      %p67 = scmp.ne.s32.totalorder %s58, %s59
      %p68 = scmp.eq.s32.totalorder %s20, 0
      %p69 = por %p67, %p68
      %p70 = scmp.ne.s32.totalorder %s58, %s59
      %p71 = scmp.eq.s32.totalorder %s21, 1
      %p72 = por %p70, %p71
      %p74 = scmp.ne.s32.totalorder %s59, %s73
      %p75 = scmp.eq.s32.totalorder %s21, 0
      %p76 = por %p74, %p75
      %s77 = ssub.s32 %s22, %s34
      %p78 = scmp.eq.s32.totalorder %s77, 0
      %s80 = sadd.s32 %s79, 1
      %s81 = scalar_select %p78, %s79, %s80
      %p84 = pneg %p78
      %p85 = scmp.eq.s32.totalorder %s15, 1
      %p86 = por %p84, %p85
      %p87 = scmp.ne.s32.totalorder %s79, %s82
      %p88 = scmp.eq.s32.totalorder %s15, 0
      %p89 = por %p87, %p88
      %p90 = scmp.ne.s32.totalorder %s79, %s82
      %p91 = scmp.eq.s32.totalorder %s20, 1
      %p92 = por %p90, %p91
      %p93 = scmp.ne.s32.totalorder %s82, %s83
      %p94 = scmp.eq.s32.totalorder %s20, 0
      %p95 = por %p93, %p94
      %p96 = scmp.ne.s32.totalorder %s82, %s83
      %p97 = scmp.eq.s32.totalorder %s21, 1
      %p98 = por %p96, %p97
      %p100 = scmp.ne.s32.totalorder %s83, %s99
      %p101 = scmp.eq.s32.totalorder %s21, 0
      %p102 = por %p100, %p101
      %s103 = ssub.s32 %s22, %s34
      %s104 = ssub.s32 %s23, %s30
      %s105 = sor.u32 %s103, %s104
      %p106 = scmp.eq.s32.totalorder %s105, 0
      %s108 = sadd.s32 %s107, 1
      %s109 = scalar_select %p106, %s107, %s108
      %p112 = pneg %p106
      %p113 = scmp.eq.s32.totalorder %s15, 1
      %p114 = por %p112, %p113
      %p115 = scmp.ne.s32.totalorder %s107, %s110
      %p116 = scmp.eq.s32.totalorder %s15, 0
      %p117 = por %p115, %p116
      %p118 = scmp.ne.s32.totalorder %s107, %s110
      %p119 = scmp.eq.s32.totalorder %s20, 1
      %p120 = por %p118, %p119
      %p121 = scmp.ne.s32.totalorder %s110, %s111
      %p122 = scmp.eq.s32.totalorder %s20, 0
      %p123 = por %p121, %p122
      %p124 = scmp.ne.s32.totalorder %s110, %s111
      %p125 = scmp.eq.s32.totalorder %s21, 1
      %p126 = por %p124, %p125
      %p128 = scmp.ne.s32.totalorder %s111, %s127
      %p129 = scmp.eq.s32.totalorder %s21, 0
      %p130 = por %p128, %p129
      %s131 = ssub.s32 %s22, %s34
      %s132 = ssub.s32 %s23, %s30
      %s133 = sor.u32 %s131, %s132
      %p134 = scmp.eq.s32.totalorder %s133, 0
      %s136 = sadd.s32 %s135, 1
      %s137 = scalar_select %p134, %s135, %s136
      %p140 = pneg %p134
      %p141 = scmp.eq.s32.totalorder %s15, 1
      %p142 = por %p140, %p141
      %p143 = scmp.ne.s32.totalorder %s135, %s138
      %p144 = scmp.eq.s32.totalorder %s15, 0
      %p145 = por %p143, %p144
      %p146 = scmp.ne.s32.totalorder %s135, %s138
      %p147 = scmp.eq.s32.totalorder %s20, 1
      %p148 = por %p146, %p147
      %p149 = scmp.ne.s32.totalorder %s138, %s139
      %p150 = scmp.eq.s32.totalorder %s20, 0
      %p151 = por %p149, %p150
      %p152 = scmp.ne.s32.totalorder %s138, %s139
      %p153 = scmp.eq.s32.totalorder %s21, 1
      %p154 = por %p152, %p153
      %p156 = scmp.ne.s32.totalorder %s139, %s155
      %p157 = scmp.eq.s32.totalorder %s21, 0
      %p158 = por %p156, %p157
      %p159 = scmp.le.s32.totalorder 1, %s15
      %p160 = scmp.lt.s32.totalorder %s15, 3
      %p161 = pnand %p159, %p160
      %p162 = pneg %p161
      // Predicated region
      $region9: #{tpu_custom_call.1} parent=5 // pred_check
        _
      $region10: #{tpu_custom_call.1} parent=5 // pred_check_branch
        %164 = sbr.rel (%p161) target = $region12
      $region11: #{tpu_custom_call.1} parent=5 // pred_region
        %s165 = ssub.s32 %s15, 1
        // Predicated region
        $region13: #{tpu_custom_call.1} parent=11 // pred_check
          %p166 = pneg %p48
        $region14: #{tpu_custom_call.1} parent=11 // pred_check_branch
          %168 = sbr.rel (%p166) target = $region16
        $region15: #{tpu_custom_call.1} parent=11 // pred_region
          %s170 = ssub.s32 16, 16
          %171 = vsyncadd [#allocation5], %s170
          %s173 = sshll.u32 %s0, 4
          %s174 = int_to_ptr.vmem [resolvable:$true] %s173
          %176 = dma.vmem_to_smem %s174, 16, [#allocation3], [#allocation5]
        $region16: #{tpu_custom_call.1} parent=11 // pred_fallthru
          _
        // Predicated region
        $region17: #{tpu_custom_call.1} parent=11 // pred_check
          %p177 = pneg %p69
        $region18: #{tpu_custom_call.1} parent=11 // pred_check_branch
          %179 = sbr.rel (%p177) target = $region20
        $region19: #{tpu_custom_call.1} parent=11 // pred_region
          _
        $region20: #{tpu_custom_call.1} parent=11 // pred_fallthru
          _
      $region12: #{tpu_custom_call.1} parent=5 // pred_fallthru
        _
      %p180 = scmp.lt.s32.totalorder %s15, 2
      // Predicated region
      $region21: #{tpu_custom_call.1} parent=5 // pred_check
        %p181 = pneg %p180
      $region22: #{tpu_custom_call.1} parent=5 // pred_check_branch
        %183 = sbr.rel (%p181) target = $region24
      $region23: #{tpu_custom_call.1} parent=5 // pred_region
        // Predicated region
        $region25: #{tpu_custom_call.1} parent=23 // pred_check
          %p184 = pneg %p89
        $region26: #{tpu_custom_call.1} parent=23 // pred_check_branch
          %186 = sbr.rel (%p184) target = $region28
        $region27: #{tpu_custom_call.1} parent=23 // pred_region
          %p187 = scmp.lt.s32.totalorder %s22, 1
          %s188 = scalar_select %p187, %s22, 1
          %s189 = smul.addr %s188, 4
          %s190 = scalar_lea.vmem %s2, %s189
        $region28: #{tpu_custom_call.1} parent=23 // pred_fallthru
          _
        // Predicated region
        $region29: #{tpu_custom_call.1} parent=23 // pred_check
          %p191 = pneg %p117
        $region30: #{tpu_custom_call.1} parent=23 // pred_check_branch
          %193 = sbr.rel (%p191) target = $region32
        $region31: #{tpu_custom_call.1} parent=23 // pred_region
          %s194 = smul.u32 2, %s23
          %p195 = scmp.lt.s32.totalorder %s22, 1
          %s196 = scalar_select %p195, %s22, 1
          %p197 = scmp.lt.s32.totalorder %s194, 1
          %s198 = scalar_select %p197, %s194, 1
          %s199 = smul.addr %s196, 2
          %s200 = sadd.s32 %s198, %s199
          %s201 = smul.addr %s200, 4
          %s202 = scalar_lea.vmem %s3, %s201
          %s203 = smul.u32 2, %s23
        $region32: #{tpu_custom_call.1} parent=23 // pred_fallthru
          _
      $region24: #{tpu_custom_call.1} parent=5 // pred_fallthru
        _
      %p204 = scmp.le.s32.totalorder 1, %s15
      %p205 = scmp.lt.s32.totalorder %s15, 3
      %p206 = pnand %p204, %p205
      %p207 = pneg %p206
      // Predicated region
      $region33: #{tpu_custom_call.1} parent=5 // pred_check
        _
      $region34: #{tpu_custom_call.1} parent=5 // pred_check_branch
        %209 = sbr.rel (%p206) target = $region36
      $region35: #{tpu_custom_call.1} parent=5 // pred_region
        %s210 = ssub.s32 %s15, 1
        // Predicated region
        $region37: #{tpu_custom_call.1} parent=35 // pred_check
          %p211 = pneg %p48
        $region38: #{tpu_custom_call.1} parent=35 // pred_check_branch
          %213 = sbr.rel (%p211) target = $region40
        $region39: #{tpu_custom_call.1} parent=35 // pred_region
          %214 = dma.done [#allocation5], 16
        $region40: #{tpu_custom_call.1} parent=35 // pred_fallthru
          _
        %215 = sfence
        %p216 = pneg %p48
        %p217 = pneg %p45
        %p218 = pneg %p69
        %p219 = pneg %p66
        %p220 = scmp.lt.s32.totalorder %s24, 1
        %s221 = scalar_select %p220, %s24, 1
        %s222 = smul.addr %s221, 4
        %s223 = scalar_lea.vmem %s2, %s222
        %p224 = pneg %p95
        %p225 = pneg %p92
        %s226 = smul.u32 2, %s25
        %p227 = scmp.lt.s32.totalorder %s24, 1
        %s228 = scalar_select %p227, %s24, 1
        %p229 = scmp.lt.s32.totalorder %s226, 1
        %s230 = scalar_select %p229, %s226, 1
        %s231 = smul.addr %s228, 2
        %s232 = sadd.s32 %s230, %s231
        %s233 = smul.addr %s232, 4
        %s234 = scalar_lea.vmem %s3, %s233
        %p235 = pneg %p123
        %p236 = pneg %p120
        %p237 = pneg %p151
        %p238 = pneg %p148
        %s239 = sand.u32 %s138, 1
        %s240 = scalar_lea.sflag [#allocation4], %s239
        %s241 = sand.u32 %s138, 1
        %s242 = smul.addr %s241, 8
        %s243 = scalar_lea.vmem [#allocation6], %s242
        %p244 = scmp.lt.s32.totalorder %s24, 1
        %s245 = scalar_select %p244, %s24, 1
        %s246 = smul.addr %s245, 4
        %s247 = scalar_lea.vmem %s2, %s246
        %s248 = smul.u32 2, %s25
        %p249 = scmp.lt.s32.totalorder %s24, 1
        %s250 = scalar_select %p249, %s24, 1
        %p251 = scmp.lt.s32.totalorder %s248, 1
        %s252 = scalar_select %p251, %s248, 1
        %s253 = smul.addr %s250, 2
        %s254 = sadd.s32 %s252, %s253
        %s255 = smul.addr %s254, 4
        %s256 = scalar_lea.vmem %s3, %s255
        %s257 = smul.u32 2, %s25
        %s258 = smul.u32 2, %s25
        %v259 = vld [vmem:[%s256] sm:$0xff]
        %s260 = sld [smem:[#allocation2]]
        %v261 = vstv %s260
        %v262 = vadd.f32 %v261, 0.0
        %s263 = sld [smem:[#allocation3]]
        %v264 = vstv %s263
        %v265 = vmul.f32 %v264, %v259
        %v266 = vadd.f32 %v262, %v265
        %s267 = sld [smem:[#allocation3 + $0x1]]
        %v268 = vstv %s267
        %v269 = vmul.f32 %v268, %v259
        %v271 = vrot.slane %v269, 5
        %v272 = vrot.slane %v271, 4
        %v274 = vadd.f32 %v266, %v272
        %s275 = sld [smem:[#allocation3 + $0x2]]
        %v276 = vstv %s275
        %v277 = vmul.f32 %v276, %v259
        %v279 = vrot.slane %v277, 6
        %v280 = vrot.slane %v279, 4
        %v282 = vadd.f32 %v274, %v280
        %s283 = sld [smem:[#allocation3 + $0x3]]
        %v284 = vstv %s283
        %v285 = vmul.f32 %v284, %v259
        %v287 = vrot.slane %v285, 7
        %v288 = vrot.slane %v287, 4
        %v290 = vadd.f32 %v282, %v288
        %v291 = vxor.u32 %v290, 2147483648
        %v292 = vmul.f32 %v291, 1.442695
        %v293 = vpow.pop %v292
        %v294 = vadd.f32 %v293, 1.0
        %v295 = vrcp.pop %v294
        %v296 = vmul.f32 1.0, %v295
        %v297 = vld [vmem:[%s247] sm:$0xf]
        %v299 = vlaneseq
        %v300 = vshrl.u32 %v299, 7
        %v301 = vsub.s32 0, %v300
        %v302 = vrot.slane %v296, %v301
        %v303 = vlaneseq
        %v304 = vshrl.u32 %v303, 7
        %v305 = vsub.s32 4, %v304
        %v306 = vrot.slane %v296, %v305
        %v309 = vlaneseq
        %v310 = vshrl.u32 %v309, 7
        %v311 = vsub.s32 0, %v310
        %v312 = vrot.slane %v302, %v311
        %v313 = vlaneseq
        %v314 = vshrl.u32 %v313, 7
        %v315 = vsub.s32 0, %v314
        %v316 = vrot.slane %v306, %v315
        %318 = vset.pattern.permute.xlu0 0
        %319 = vperm.xlu0 %318, %v297
        %v320 = vpop.permute.xlu0 %319
        %v322 = vadd.f32 %v312, %v320
        %v323 = vadd.f32 %v316, %v320
        %v326 = vcombine.low %v322, %v323
        %v328 = vmul.f32 %v259, %v326
        %329 = vst [vmem:[%s243] sm:$0xff] %v328
        %s330 = sand.u32 %s138, 1
        %s331 = scalar_lea.sflag [#allocation4], %s330
        %s332 = sand.u32 %s138, 1
        %s333 = smul.addr %s332, 8
        %s334 = scalar_lea.vmem [#allocation6], %s333
        // Predicated region
        $region41: #{tpu_custom_call.1} parent=35 // pred_check
          %p335 = pneg %p148
        $region42: #{tpu_custom_call.1} parent=35 // pred_check_branch
          %337 = sbr.rel (%p335) target = $region44
        $region43: #{tpu_custom_call.1} parent=35 // pred_region
          %s338 = smul.u32 2, %s25
          %s340 = ssub.s32 128, 128
          %341 = vsyncadd %s331, %s340
          %s342 = smul.addr %s24, 2
          %s343 = sadd.s32 %s338, %s342
          %s344 = smul.addr %s343, 64
          %s345 = scalar_lea.hbm %s4, %s344
          %s347 = sshll.u32 %s334, 4
          %s348 = int_to_ptr.vmem [resolvable:$true] %s347
          %350 = dma.vmem_to_hbm [thread:$0]  %s348, 128, %s345, %s331
        $region44: #{tpu_custom_call.1} parent=35 // pred_fallthru
          _
      $region36: #{tpu_custom_call.1} parent=5 // pred_fallthru
        _
      %p351 = scmp.le.s32.totalorder 2, %s15
      // Predicated region
      $region45: #{tpu_custom_call.1} parent=5 // pred_check
        %p352 = pneg %p351
      $region46: #{tpu_custom_call.1} parent=5 // pred_check_branch
        %354 = sbr.rel (%p352) target = $region48
      $region47: #{tpu_custom_call.1} parent=5 // pred_region
        %s355 = ssub.s32 %s15, 2
        // Predicated region
        $region49: #{tpu_custom_call.1} parent=47 // pred_check
          %p356 = pneg %p154
        $region50: #{tpu_custom_call.1} parent=47 // pred_check_branch
          %358 = sbr.rel (%p356) target = $region52
        $region51: #{tpu_custom_call.1} parent=47 // pred_region
          %s359 = sand.u32 %s139, 1
          %s360 = scalar_lea.sflag [#allocation4], %s359
          %s361 = sand.u32 %s139, 1
          %s362 = smul.addr %s361, 8
          %s363 = scalar_lea.vmem [#allocation6], %s362
          %364 = dma.done %s360, 128
        $region52: #{tpu_custom_call.1} parent=47 // pred_fallthru
          _
      $region48: #{tpu_custom_call.1} parent=5 // pred_fallthru
        _
    $region6: #{tpu_custom_call.1} parent=1 // loop_footer
      %s19 = sadd.s32 1, %s15
    $region7: #{tpu_custom_call.1} parent=1 // loop_footer_branch
      %14 = sbr.rel target = $region3
    $region8: #{tpu_custom_call.1} parent=1 // loop_exit
      _
    %365 = vsyncpa [#allocation4], 1
    %s366 = scalar_lea.sflag [#allocation4], 1
    %367 = vsyncpa %s366, 1
    %368 = vsyncpa [#allocation5], 1
    %s369 = scalar_lea.sflag [#allocation5], 1
    %370 = vsyncpa %s369, 1

</llo_original>
